<compile_context>
chip_gen: v6e
topology: v6e:2x2x1
jax: 0.10.0
libtpu: 0.0.40
codegen_flags: <defaults>
</compile_context>

<pallas_src>
import functools

import jax
import jax.numpy as jnp
from jax.experimental import pallas as pl
from jax.experimental.pallas import tpu as pltpu

LANE = 128   # vreg lane width  (last dim)
SUB = 8      # vreg sublane width (second-to-last dim)


def _round_up(n, m):
    return ((n + m - 1) // m) * m


def _pick_out_tile(out_pad):
    """Largest lane-dense output tile (<=512) that divides out_pad."""
    if out_pad <= 512:
        return out_pad
    for t in (512, 256, 128):
        if out_pad % t == 0:
            return t
    return 128  # unreachable: out_pad is always a multiple of 128


# ----------------------------------------------------------------------------
# Kernel
# ----------------------------------------------------------------------------
def policy_net_kernel(x_ref, w1_ref, w2_ref, w3_ref, p_ref, h2_ref, *, valid_b):
    """Grid axis = 128/512-wide output-column tiles (softmax over dim=0 is
    independent per column).  fc1/fc2 depend only on x, so they run once and
    the h2 activation is cached in VMEM scratch for every other tile."""

    @pl.when(pl.program_id(0) == 0)
    def _():
        # Biases are folded in: x carries a ones column, each slab carries its
        # bias row and propagates the ones column to the next layer.
        h1 = jnp.maximum(
            jnp.dot(x_ref[...], w1_ref[...], preferred_element_type=jnp.float32),
            0.0)
        h2_ref[...] = jnp.maximum(
            jnp.dot(h1, w2_ref[...], preferred_element_type=jnp.float32),
            0.0)

    # fc3 for this output-column tile (bias via the ones column of h2).
    logits = jnp.dot(h2_ref[...], w3_ref[...], preferred_element_type=jnp.float32)

    # Softmax over dim=0 (batch axis).  If the batch was padded to a sublane
    # multiple, mask the padded rows to -inf so they add nothing to the sums.
    if valid_b < logits.shape[0]:
        row = jax.lax.broadcasted_iota(jnp.int32, logits.shape, 0)
        logits = jnp.where(row < valid_b, logits,
                           jnp.full_like(logits, -jnp.inf))

    m = jnp.max(logits, axis=0, keepdims=True)
    e = jnp.exp(logits - m)
    s = jnp.sum(e, axis=0, keepdims=True)
    p_ref[...] = e / s            # exact divide: columns sum to 1 to f32 rounding


# ----------------------------------------------------------------------------
# One-time packing + jitted forward
# ----------------------------------------------------------------------------
def pack_params(params):
    """Pack torch-layout (fan_out, fan_in) weights into lane-dense slabs with
    the bias folded into the row addressed by the previous layer's ones column.
    Done ONCE at setup; static across forward calls."""
    w1, b1 = params["w1"], params["b1"]   # (h1, in), (h1,)
    w2, b2 = params["w2"], params["b2"]   # (h2, h1), (h2,)
    w3, b3 = params["w3"], params["b3"]   # (out, h2), (out,)

    in_dim, h1_dim, h2_dim, out_dim = w1.shape[1], w1.shape[0], w2.shape[0], w3.shape[0]

    # +1 so there is always a free row/column for the bias / ones column.
    in_pad = _round_up(in_dim + 1, LANE)
    h1_pad = _round_up(h1_dim + 1, LANE)
    h2_pad = _round_up(h2_dim + 1, LANE)
    out_pad = _round_up(out_dim, LANE)

    def pack(w, b, rows_pad, cols_pad, ones_col=None):
        fan_out, fan_in = w.shape
        a = jnp.zeros((rows_pad, cols_pad), jnp.float32)
        a = a.at[:fan_in, :fan_out].set(w.T)        # (in, out) layout
        a = a.at[fan_in, :fan_out].set(b)           # bias row (hit by ones column)
        if ones_col is not None:
            a = a.at[fan_in, ones_col].set(1.0)     # propagate ones column forward
        return a

    return {
        "w1p": pack(w1, b1, in_pad, h1_pad, ones_col=h1_dim),   # (in_pad, h1_pad)
        "w2p": pack(w2, b2, h1_pad, h2_pad, ones_col=h2_dim),   # (h1_pad, h2_pad)
        "w3p": pack(w3, b3, h2_pad, out_pad),                   # (h2_pad, out_pad)
        "dims": (in_dim, out_dim, in_pad, h1_pad, h2_pad, out_pad),
    }


def make_policy_net(params):
    """Returns a jitted forward(x) with weights pre-packed and captured."""
    packed = pack_params(params)
    in_dim, out_dim, in_pad, h1_pad, h2_pad, out_pad = packed["dims"]
    w1p, w2p, w3p = packed["w1p"], packed["w2p"], packed["w3p"]

    tn = _pick_out_tile(out_pad)
    grid = (out_pad // tn,)

    @jax.jit
    def forward(x):
        B = x.shape[0]
        b_pad = _round_up(B, SUB)

        # Lane-dense x with a ones column at in_dim (fc1 bias pickup).
        x_p = jnp.zeros((b_pad, in_pad), jnp.float32)
        x_p = x_p.at[:B, :in_dim].set(x)
        x_p = x_p.at[:B, in_dim].set(1.0)

        kernel = functools.partial(policy_net_kernel, valid_b=B)

        out_padded = pl.pallas_call(
            kernel,
            out_shape=jax.ShapeDtypeStruct((b_pad, out_pad), jnp.float32),
            grid=grid,
            in_specs=[
                pl.BlockSpec((b_pad, in_pad), lambda j: (0, 0)),    # x, resident
                pl.BlockSpec((in_pad, h1_pad), lambda j: (0, 0)),   # fc1 slab, resident
                pl.BlockSpec((h1_pad, h2_pad), lambda j: (0, 0)),   # fc2 slab, resident
                pl.BlockSpec((h2_pad, tn), lambda j: (0, j)),       # fc3 column tile
            ],
            out_specs=pl.BlockSpec((b_pad, tn), lambda j: (0, j)),  # lane-dense store
            scratch_shapes=[pltpu.VMEM((b_pad, h2_pad), jnp.float32)],  # cached h2
            # "arbitrary": the h2 scratch carries state across the axis.  For
            # v7x dual-TC sharding one would drop the scratch cache and mark
            # it "parallel" instead (only matters once out_pad >= 2 tiles).
            compiler_params=pltpu.CompilerParams(
                dimension_semantics=("arbitrary",)),
        )(x_p, w1p, w2p, w3p)

        return out_padded[:B, :out_dim]

    return forward


# ----------------------------------------------------------------------------
# Init + pure-JAX reference
# ----------------------------------------------------------------------------
def init_params(key, in_dim, hidden_dims, out_dim):
    """Deterministic init mimicking nn.Linear's U(-1/sqrt(fan_in), 1/sqrt(fan_in))."""
    ks = jax.random.split(key, 6)

    def linear(kw, kb, fan_in, fan_out):
        bound = 1.0 / jnp.sqrt(jnp.float32(fan_in))
        w = jax.random.uniform(kw, (fan_out, fan_in), jnp.float32, -bound, bound)
        b = jax.random.uniform(kb, (fan_out,), jnp.float32, -bound, bound)
        return w, b

    w1, b1 = linear(ks[0], ks[1], in_dim, hidden_dims[0])
    w2, b2 = linear(ks[2], ks[3], hidden_dims[0], hidden_dims[1])
    w3, b3 = linear(ks[4], ks[5], hidden_dims[1], out_dim)
    return {"w1": w1, "b1": b1, "w2": w2, "b2": b2, "w3": w3, "b3": b3}


def reference_forward(x, params):
    """Pure-JAX f32 reference of the PyTorch forward (highest matmul precision)."""
    hp = jax.lax.Precision.HIGHEST
    h1 = jnp.maximum(jnp.dot(x, params["w1"].T, precision=hp) + params["b1"], 0.0)
    h2 = jnp.maximum(jnp.dot(h1, params["w2"].T, precision=hp) + params["b2"], 0.0)
    logits = jnp.dot(h2, params["w3"].T, precision=hp) + params["b3"]
    return jax.nn.softmax(logits, axis=0)


if __name__ == "__main__":
    key = jax.random.PRNGKey(0)
    k_params, k_x = jax.random.split(key)

    batch = 8
    in_dim = 32
    hidden_dims = (64, 32)
    out_dim = 16

    params = init_params(k_params, in_dim, hidden_dims, out_dim)
    x = jax.random.normal(k_x, (batch, in_dim), jnp.float32)

    forward = make_policy_net(params)          # packs weights once, jits forward
    p = jax.block_until_ready(forward(x))

    p_ref = reference_forward(x, params)
    assert p.shape == (batch, out_dim)
    # Generous tolerance covers MXU vs XLA f32-matmul pass differences on HW.
    assert jnp.allclose(p, p_ref, atol=2e-3, rtol=2e-2), "mismatch vs reference"
    # softmax over dim=0 with exact divide -> each column sums to 1 (f32 rounding).
    assert jnp.allclose(jnp.sum(p, axis=0), jnp.ones((out_dim,)), atol=1e-5)

    print("KERNEL_OK")
</pallas_src>

<mosaic_0001>
module attributes {stable_mosaic.version = 11 : i64} {
  func.func @policy_net_kernel(%arg0: i32, %arg1: memref<8x128xf32, #tpu.memory_space<vmem>>, %arg2: memref<128x128xf32, #tpu.memory_space<vmem>>, %arg3: memref<128x128xf32, #tpu.memory_space<vmem>>, %arg4: memref<128x128xf32, #tpu.memory_space<vmem>>, %arg5: memref<8x128xf32, #tpu.memory_space<vmem>>, %arg6: memref<8x128xf32, #tpu.memory_space<vmem>>) attributes {dimension_semantics = [#tpu.dimension_semantics<arbitrary>], iteration_bounds = array<i64: 1>, scalar_prefetch = 0 : i64, scratch_operands = 1 : i64, tpu.core_type = #tpu.core_type<tc>, window_params = [{pipeline_mode = #tpu.pipeline_mode<synchronous>, transform_indices = @transform_0, window_bounds = array<i64: 8, 128>}, {pipeline_mode = #tpu.pipeline_mode<synchronous>, transform_indices = @transform_1, window_bounds = array<i64: 128, 128>}, {pipeline_mode = #tpu.pipeline_mode<synchronous>, transform_indices = @transform_2, window_bounds = array<i64: 128, 128>}, {transform_indices = @transform_3, window_bounds = array<i64: 128, 128>}, {transform_indices = @transform_4, window_bounds = array<i64: 8, 128>}]} {
    %c0_i32 = arith.constant 0 : i32
    %0 = arith.cmpi eq, %arg0, %c0_i32 : i32
    %1 = arith.extui %0 : i1 to i32
    %c0_i32_0 = arith.constant 0 : i32
    %2 = arith.cmpi ne, %1, %c0_i32_0 : i32
    scf.if %2 {
      %c0_8 = arith.constant 0 : index
      %c0_9 = arith.constant 0 : index
      %16 = vector.load %arg1[%c0_8, %c0_9] : memref<8x128xf32, #tpu.memory_space<vmem>>, vector<8x128xf32>
      %c0_10 = arith.constant 0 : index
      %c0_11 = arith.constant 0 : index
      %17 = vector.load %arg2[%c0_10, %c0_11] : memref<128x128xf32, #tpu.memory_space<vmem>>, vector<128x128xf32>
      %cst_12 = arith.constant dense<0.000000e+00> : vector<8x128xf32>
      %18 = tpu.matmul %16, %17, %cst_12 {dimension_numbers = #tpu.dot_dimension_numbers<[1], [0], [0], [1], [0, 0, 1, 1], [], []>} : vector<8x128xf32>, vector<128x128xf32>, vector<8x128xf32> -> vector<8x128xf32>
      %cst_13 = arith.constant 0.000000e+00 : f32
      %19 = vector.broadcast %cst_13 : f32 to vector<8x128xf32>
      %20 = arith.maximumf %18, %19 : vector<8x128xf32>
      %c0_14 = arith.constant 0 : index
      %c0_15 = arith.constant 0 : index
      %21 = vector.load %arg3[%c0_14, %c0_15] : memref<128x128xf32, #tpu.memory_space<vmem>>, vector<128x128xf32>
      %cst_16 = arith.constant dense<0.000000e+00> : vector<8x128xf32>
      %22 = tpu.matmul %20, %21, %cst_16 {dimension_numbers = #tpu.dot_dimension_numbers<[1], [0], [0], [1], [0, 0, 1, 1], [], []>} : vector<8x128xf32>, vector<128x128xf32>, vector<8x128xf32> -> vector<8x128xf32>
      %cst_17 = arith.constant 0.000000e+00 : f32
      %23 = vector.broadcast %cst_17 : f32 to vector<8x128xf32>
      %24 = arith.maximumf %22, %23 : vector<8x128xf32>
      %c0_18 = arith.constant 0 : index
      %c0_19 = arith.constant 0 : index
      %25 = vector.load %arg6[%c0_18, %c0_19] : memref<8x128xf32, #tpu.memory_space<vmem>>, vector<8x128xf32>
      tpu.vector_store %arg6[%c0_18, %c0_19], %24 {strides = array<i32>} : memref<8x128xf32, #tpu.memory_space<vmem>>, vector<8x128xf32>,
    } else {
    }
    %c0 = arith.constant 0 : index
    %c0_1 = arith.constant 0 : index
    %3 = vector.load %arg6[%c0, %c0_1] : memref<8x128xf32, #tpu.memory_space<vmem>>, vector<8x128xf32>
    %c0_2 = arith.constant 0 : index
    %c0_3 = arith.constant 0 : index
    %4 = vector.load %arg4[%c0_2, %c0_3] : memref<128x128xf32, #tpu.memory_space<vmem>>, vector<128x128xf32>
    %cst = arith.constant dense<0.000000e+00> : vector<8x128xf32>
    %5 = tpu.matmul %3, %4, %cst {dimension_numbers = #tpu.dot_dimension_numbers<[1], [0], [0], [1], [0, 0, 1, 1], [], []>} : vector<8x128xf32>, vector<128x128xf32>, vector<8x128xf32> -> vector<8x128xf32>
    %cst_4 = arith.constant dense<0xFF800000> : vector<128xf32>
    %6 = vector.multi_reduction <maximumf>, %5, %cst_4 [0] : vector<8x128xf32> to vector<128xf32>
    %7 = vector.shape_cast %6 : vector<128xf32> to vector<1x128xf32>
    %8 = vector.broadcast %7 : vector<1x128xf32> to vector<8x128xf32>
    %9 = arith.subf %5, %8 : vector<8x128xf32>
    %10 = math.exp %9 : vector<8x128xf32>
    %cst_5 = arith.constant dense<0.000000e+00> : vector<128xf32>
    %11 = vector.multi_reduction <add>, %10, %cst_5 [0] : vector<8x128xf32> to vector<128xf32>
    %12 = vector.shape_cast %11 : vector<128xf32> to vector<1x128xf32>
    %13 = vector.broadcast %12 : vector<1x128xf32> to vector<8x128xf32>
    %14 = arith.divf %10, %13 : vector<8x128xf32>
    %c0_6 = arith.constant 0 : index
    %c0_7 = arith.constant 0 : index
    %15 = vector.load %arg5[%c0_6, %c0_7] : memref<8x128xf32, #tpu.memory_space<vmem>>, vector<8x128xf32>
    tpu.vector_store %arg5[%c0_6, %c0_7], %14 {strides = array<i32>} : memref<8x128xf32, #tpu.memory_space<vmem>>, vector<8x128xf32>,
    return
  }
  func.func @transform_0(%arg0: i32) -> (i32, i32) {
    %c0_i32 = arith.constant 0 : i32
    %c0_i32_0 = arith.constant 0 : i32
    %c0_i32_1 = arith.constant 0 : i32
    return %c0_i32, %c0_i32_0 : i32, i32
  }
  func.func @transform_1(%arg0: i32) -> (i32, i32) {
    %c0_i32 = arith.constant 0 : i32
    %c0_i32_0 = arith.constant 0 : i32
    %c0_i32_1 = arith.constant 0 : i32
    return %c0_i32, %c0_i32_0 : i32, i32
  }
  func.func @transform_2(%arg0: i32) -> (i32, i32) {
    %c0_i32 = arith.constant 0 : i32
    %c0_i32_0 = arith.constant 0 : i32
    %c0_i32_1 = arith.constant 0 : i32
    return %c0_i32, %c0_i32_0 : i32, i32
  }
  func.func @transform_3(%arg0: i32) -> (i32, i32) {
    %c0_i32 = arith.constant 0 : i32
    %c0_i32_0 = arith.constant 0 : i32
    return %c0_i32, %arg0 : i32, i32
  }
  func.func @transform_4(%arg0: i32) -> (i32, i32) {
    %c0_i32 = arith.constant 0 : i32
    %c0_i32_0 = arith.constant 0 : i32
    return %c0_i32, %arg0 : i32, i32
  }
}

</mosaic_0001>

<llo_original>
// kernel: forward.1
$region0: #{forward.1}
  #allocation0 [shape = 'u32[]', space=smem, size = 0x4, offset = 0x4, fixed_abs, tag = 'smem constant byte address 0x4 - core index']
  #allocation1 [shape = 'u32[144,128]{1,0:T(1,128)}', space=vmem, size = 0x12000, scoped, tag = 'internal scratch']
  #allocation2 [shape = 'f32[8,128]{1,0:T(8,128)}', space=vmem, size = 0x1000, scoped, tag = 'scratch operand']
  %s0 = inlined_call_operand.vmem [shape: f32[8,128], index: 0, kind: input, shape index: {}]
  %s1 = inlined_call_operand.hbm [shape: f32[128,128], index: 1, kind: input, shape index: {}]
  %s2 = inlined_call_operand.hbm [shape: f32[128,128], index: 2, kind: input, shape index: {}]
  %s3 = inlined_call_operand.hbm [shape: f32[128,128], index: 3, kind: input, shape index: {}]
  %s4 = inlined_call_operand.hbm [shape: f32[8,128], index: 4, kind: output, shape index: {}]
  %s5 = sld [smem:[#allocation0]]
  $region42: #{forward.1} parent=0
    _
  %s7 = ssub.s32 1, %s5
  %s8 = scalar_select 0, %s7, %s5
  $region1: #{forward.1} parent=0
    #allocation3 [shape = 'u8[65536]{0}', space=vmem, size = 0x10000, scoped, tag = 'input window, operand 1, single buffered']
    #allocation4 [shape = 's32[1]{0}', space=sflag, size = 0x4, scoped, tag = 'scoped memory for forward.1']
    #allocation5 [shape = 's32[1]{0}', space=sflag, size = 0x4, scoped, tag = 'scoped memory for forward.1']
    #allocation6 [shape = 'u8[65536]{0}', space=vmem, size = 0x10000, scoped, tag = 'input window, operand 2, single buffered']
    #allocation7 [shape = 's32[1]{0}', space=sflag, size = 0x4, scoped, tag = 'scoped memory for forward.1']
    #allocation8 [shape = 'u8[65536]{0}', space=vmem, size = 0x10000, scoped, tag = 'input window, operand 3, single buffered']
    #allocation9 [shape = 'u8[4096]{0}', space=vmem, size = 0x1000, scoped, tag = 'output window, operand 0, single buffered']
    %9 = vsyncpa [#allocation4], 0
    %10 = vsyncpa [#allocation7], 0
    %11 = vsyncpa [#allocation5], 0
    // Predicated region
    $region2: #{forward.1} parent=1 // pred_check
      _
    $region3: #{forward.1} parent=1 // pred_check_branch
      %13 = sbr.rel (0) target = $region5
    $region4: #{forward.1} parent=1 // pred_region
      _
    $region5: #{forward.1} parent=1 // pred_fallthru
      _
    // Predicated region
    $region6: #{forward.1} parent=1 // pred_check
      _
    $region7: #{forward.1} parent=1 // pred_check_branch
      %15 = sbr.rel (0) target = $region9
    $region8: #{forward.1} parent=1 // pred_region
      %s17 = ssub.s32 2048, 2048
      %18 = vsyncadd [#allocation4], %s17
      %s19 = sshll.u32 [#allocation3], 4
      %s20 = int_to_ptr.vmem [resolvable:$true] %s19
      %25 = dma.hbm_to_vmem [thread:$0]  %s1, 2048, %s20, [#allocation4], 128, 128, 8
    $region9: #{forward.1} parent=1 // pred_fallthru
      _
    // Predicated region
    $region10: #{forward.1} parent=1 // pred_check
      _
    $region11: #{forward.1} parent=1 // pred_check_branch
      %27 = sbr.rel (0) target = $region13
    $region12: #{forward.1} parent=1 // pred_region
      %s29 = ssub.s32 2048, 2048
      %30 = vsyncadd [#allocation7], %s29
      %s31 = sshll.u32 [#allocation6], 4
      %s32 = int_to_ptr.vmem [resolvable:$true] %s31
      %37 = dma.hbm_to_vmem [thread:$0]  %s2, 2048, %s32, [#allocation7], 128, 128, 8
    $region13: #{forward.1} parent=1 // pred_fallthru
      _
    // Predicated region
    $region14: #{forward.1} parent=1 // pred_check
      _
    $region15: #{forward.1} parent=1 // pred_check_branch
      %39 = sbr.rel (0) target = $region17
    $region16: #{forward.1} parent=1 // pred_region
      %s41 = ssub.s32 2048, 2048
      %42 = vsyncadd [#allocation7], %s41
      %s43 = sshll.u32 [#allocation8], 4
      %s44 = int_to_ptr.vmem [resolvable:$true] %s43
      %49 = dma.hbm_to_vmem [thread:$0]  %s3, 2048, %s44, [#allocation7], 128, 128, 8
    $region17: #{forward.1} parent=1 // pred_fallthru
      _
    // Predicated region
    $region18: #{forward.1} parent=1 // pred_check
      _
    $region19: #{forward.1} parent=1 // pred_check_branch
      %51 = sbr.rel (0) target = $region21
    $region20: #{forward.1} parent=1 // pred_region
      %52 = dma.done [#allocation4], 2048
    $region21: #{forward.1} parent=1 // pred_fallthru
      _
    // Predicated region
    $region22: #{forward.1} parent=1 // pred_check
      _
    $region23: #{forward.1} parent=1 // pred_check_branch
      %54 = sbr.rel (0) target = $region25
    $region24: #{forward.1} parent=1 // pred_region
      %55 = dma.done [#allocation7], 2048
    $region25: #{forward.1} parent=1 // pred_fallthru
      _
    // Predicated region
    $region26: #{forward.1} parent=1 // pred_check
      _
    $region27: #{forward.1} parent=1 // pred_check_branch
      %57 = sbr.rel (0) target = $region29
    $region28: #{forward.1} parent=1 // pred_region
      %58 = dma.done [#allocation7], 2048
    $region29: #{forward.1} parent=1 // pred_fallthru
      _
    %p59 = scmp.eq.s32.totalorder 0, 0
    // Predicated region
    $region30: #{forward.1} parent=1 // pred_check
      %p60 = pneg %p59
    $region31: #{forward.1} parent=1 // pred_check_branch
      %62 = sbr.rel (%p60) target = $region33
    $region32: #{forward.1} parent=1 // pred_region
      %v63 = vld [vmem:[%s0] sm:$0xff]
      %v64 = vld [vmem:[#allocation3] sm:$0xff]
      %v65 = vld [vmem:[#allocation3 + $0x8] sm:$0xff]
      %v66 = vld [vmem:[#allocation3 + $0x10] sm:$0xff]
      %v67 = vld [vmem:[#allocation3 + $0x18] sm:$0xff]
      %v68 = vld [vmem:[#allocation3 + $0x20] sm:$0xff]
      %v69 = vld [vmem:[#allocation3 + $0x28] sm:$0xff]
      %v70 = vld [vmem:[#allocation3 + $0x30] sm:$0xff]
      %v71 = vld [vmem:[#allocation3 + $0x38] sm:$0xff]
      %v72 = vld [vmem:[#allocation3 + $0x40] sm:$0xff]
      %v73 = vld [vmem:[#allocation3 + $0x48] sm:$0xff]
      %v74 = vld [vmem:[#allocation3 + $0x50] sm:$0xff]
      %v75 = vld [vmem:[#allocation3 + $0x58] sm:$0xff]
      %v76 = vld [vmem:[#allocation3 + $0x60] sm:$0xff]
      %v77 = vld [vmem:[#allocation3 + $0x68] sm:$0xff]
      %v78 = vld [vmem:[#allocation3 + $0x70] sm:$0xff]
      %v79 = vld [vmem:[#allocation3 + $0x78] sm:$0xff]
      %80 = vmatprep.subr.mxu0 0.0
      %81 = vmatpush1.msra.mxu0 %v79
      %82 = vmatprep.subr.mxu0 0.0
      %83 = vmatpush1.msra.mxu0 %v78
      %84 = vmatprep.subr.mxu0 0.0
      %85 = vmatpush1.msra.mxu0 %v77
      %86 = vmatprep.subr.mxu0 0.0
      %87 = vmatpush1.msra.mxu0 %v76
      %88 = vmatprep.subr.mxu0 0.0
      %89 = vmatpush1.msra.mxu0 %v75
      %90 = vmatprep.subr.mxu0 0.0
      %91 = vmatpush1.msra.mxu0 %v74
      %92 = vmatprep.subr.mxu0 0.0
      %93 = vmatpush1.msra.mxu0 %v73
      %94 = vmatprep.subr.mxu0 0.0
      %95 = vmatpush1.msra.mxu0 %v72
      %96 = vmatprep.subr.mxu0 0.0
      %97 = vmatpush1.msra.mxu0 %v71
      %98 = vmatprep.subr.mxu0 0.0
      %99 = vmatpush1.msra.mxu0 %v70
      %100 = vmatprep.subr.mxu0 0.0
      %101 = vmatpush1.msra.mxu0 %v69
      %102 = vmatprep.subr.mxu0 0.0
      %103 = vmatpush1.msra.mxu0 %v68
      %104 = vmatprep.subr.mxu0 0.0
      %105 = vmatpush1.msra.mxu0 %v67
      %106 = vmatprep.subr.mxu0 0.0
      %107 = vmatpush1.msra.mxu0 %v66
      %108 = vmatprep.subr.mxu0 0.0
      %109 = vmatpush1.msra.mxu0 %v65
      %110 = vmatprep.subr.mxu0 0.0
      %111 = vmatpush1.msra.mxu0 %v64
      %112 = vmatprep.subr.mxu0 0.0
      %113 = vmatpush2.msra.mxu0 0.0
      %114 = vmatprep.subr.mxu0 0.0
      %115 = vmatpush2.msra.mxu0 0.0
      %116 = vmatprep.subr.mxu0 0.0
      %117 = vmatpush2.msra.mxu0 0.0
      %118 = vmatprep.subr.mxu0 0.0
      %119 = vmatpush2.msra.mxu0 0.0
      %120 = vmatprep.subr.mxu0 0.0
      %121 = vmatpush2.msra.mxu0 0.0
      %122 = vmatprep.subr.mxu0 0.0
      %123 = vmatpush2.msra.mxu0 0.0
      %124 = vmatprep.subr.mxu0 0.0
      %125 = vmatpush2.msra.mxu0 0.0
      %126 = vmatprep.subr.mxu0 0.0
      %127 = vmatpush2.msra.mxu0 0.0
      %128 = vmatprep.subr.mxu0 0.0
      %129 = vmatpush2.msra.mxu0 0.0
      %130 = vmatprep.subr.mxu0 0.0
      %131 = vmatpush2.msra.mxu0 0.0
      %132 = vmatprep.subr.mxu0 0.0
      %133 = vmatpush2.msra.mxu0 0.0
      %134 = vmatprep.subr.mxu0 0.0
      %135 = vmatpush2.msra.mxu0 0.0
      %136 = vmatprep.subr.mxu0 0.0
      %137 = vmatpush2.msra.mxu0 0.0
      %138 = vmatprep.subr.mxu0 0.0
      %139 = vmatpush2.msra.mxu0 0.0
      %140 = vmatprep.subr.mxu0 0.0
      %141 = vmatpush2.msra.mxu0 0.0
      %142 = vmatprep.subr.mxu0 0.0
      %143 = vmatpush2.msra.mxu0 0.0
      %144 = vmatprep.mubr.f32.mxu0 0.0
      %145 = vmatmul.mubr.f32.gmra.mxu0 %v63
      %v146 = vpop.f32.mrf.mxu0
      %v147 = vadd.f32 0.0, %v146
      %v148 = vpop.f32.mrf.mxu0
      %149 = vdwg.mxu0
      %v150 = vmax.f32 %v147, 0.0
      %v151 = vld [vmem:[#allocation6] sm:$0xff]
      %v152 = vld [vmem:[#allocation6 + $0x8] sm:$0xff]
      %v153 = vld [vmem:[#allocation6 + $0x10] sm:$0xff]
      %v154 = vld [vmem:[#allocation6 + $0x18] sm:$0xff]
      %v155 = vld [vmem:[#allocation6 + $0x20] sm:$0xff]
      %v156 = vld [vmem:[#allocation6 + $0x28] sm:$0xff]
      %v157 = vld [vmem:[#allocation6 + $0x30] sm:$0xff]
      %v158 = vld [vmem:[#allocation6 + $0x38] sm:$0xff]
      %v159 = vld [vmem:[#allocation6 + $0x40] sm:$0xff]
      %v160 = vld [vmem:[#allocation6 + $0x48] sm:$0xff]
      %v161 = vld [vmem:[#allocation6 + $0x50] sm:$0xff]
      %v162 = vld [vmem:[#allocation6 + $0x58] sm:$0xff]
      %v163 = vld [vmem:[#allocation6 + $0x60] sm:$0xff]
      %v164 = vld [vmem:[#allocation6 + $0x68] sm:$0xff]
      %v165 = vld [vmem:[#allocation6 + $0x70] sm:$0xff]
      %v166 = vld [vmem:[#allocation6 + $0x78] sm:$0xff]
      %167 = vmatprep.subr.mxu0 0.0
      %168 = vmatpush1.msra.mxu0 %v166
      %169 = vmatprep.subr.mxu0 0.0
      %170 = vmatpush1.msra.mxu0 %v165
      %171 = vmatprep.subr.mxu0 0.0
      %172 = vmatpush1.msra.mxu0 %v164
      %173 = vmatprep.subr.mxu0 0.0
      %174 = vmatpush1.msra.mxu0 %v163
      %175 = vmatprep.subr.mxu0 0.0
      %176 = vmatpush1.msra.mxu0 %v162
      %177 = vmatprep.subr.mxu0 0.0
      %178 = vmatpush1.msra.mxu0 %v161
      %179 = vmatprep.subr.mxu0 0.0
      %180 = vmatpush1.msra.mxu0 %v160
      %181 = vmatprep.subr.mxu0 0.0
      %182 = vmatpush1.msra.mxu0 %v159
      %183 = vmatprep.subr.mxu0 0.0
      %184 = vmatpush1.msra.mxu0 %v158
      %185 = vmatprep.subr.mxu0 0.0
      %186 = vmatpush1.msra.mxu0 %v157
      %187 = vmatprep.subr.mxu0 0.0
      %188 = vmatpush1.msra.mxu0 %v156
      %189 = vmatprep.subr.mxu0 0.0
      %190 = vmatpush1.msra.mxu0 %v155
      %191 = vmatprep.subr.mxu0 0.0
      %192 = vmatpush1.msra.mxu0 %v154
      %193 = vmatprep.subr.mxu0 0.0
      %194 = vmatpush1.msra.mxu0 %v153
      %195 = vmatprep.subr.mxu0 0.0
      %196 = vmatpush1.msra.mxu0 %v152
      %197 = vmatprep.subr.mxu0 0.0
      %198 = vmatpush1.msra.mxu0 %v151
      %199 = vmatprep.subr.mxu0 0.0
      %200 = vmatpush2.msra.mxu0 0.0
      %201 = vmatprep.subr.mxu0 0.0
      %202 = vmatpush2.msra.mxu0 0.0
      %203 = vmatprep.subr.mxu0 0.0
      %204 = vmatpush2.msra.mxu0 0.0
      %205 = vmatprep.subr.mxu0 0.0
      %206 = vmatpush2.msra.mxu0 0.0
      %207 = vmatprep.subr.mxu0 0.0
      %208 = vmatpush2.msra.mxu0 0.0
      %209 = vmatprep.subr.mxu0 0.0
      %210 = vmatpush2.msra.mxu0 0.0
      %211 = vmatprep.subr.mxu0 0.0
      %212 = vmatpush2.msra.mxu0 0.0
      %213 = vmatprep.subr.mxu0 0.0
      %214 = vmatpush2.msra.mxu0 0.0
      %215 = vmatprep.subr.mxu0 0.0
      %216 = vmatpush2.msra.mxu0 0.0
      %217 = vmatprep.subr.mxu0 0.0
      %218 = vmatpush2.msra.mxu0 0.0
      %219 = vmatprep.subr.mxu0 0.0
      %220 = vmatpush2.msra.mxu0 0.0
      %221 = vmatprep.subr.mxu0 0.0
      %222 = vmatpush2.msra.mxu0 0.0
      %223 = vmatprep.subr.mxu0 0.0
      %224 = vmatpush2.msra.mxu0 0.0
      %225 = vmatprep.subr.mxu0 0.0
      %226 = vmatpush2.msra.mxu0 0.0
      %227 = vmatprep.subr.mxu0 0.0
      %228 = vmatpush2.msra.mxu0 0.0
      %229 = vmatprep.subr.mxu0 0.0
      %230 = vmatpush2.msra.mxu0 0.0
      %231 = vmatprep.mubr.f32.mxu0 0.0
      %232 = vmatmul.mubr.f32.gmra.mxu0 %v150
      %v233 = vpop.f32.mrf.mxu0
      %v234 = vadd.f32 0.0, %v233
      %v235 = vpop.f32.mrf.mxu0
      %236 = vdwg.mxu0
      %v237 = vmax.f32 %v234, 0.0
      %238 = vst [vmem:[#allocation2] sm:$0xff] %v237
    $region33: #{forward.1} parent=1 // pred_fallthru
      _
    %v239 = vld [vmem:[#allocation2] sm:$0xff]
    %v240 = vld [vmem:[#allocation8] sm:$0xff]
    %v241 = vld [vmem:[#allocation8 + $0x8] sm:$0xff]
    %v242 = vld [vmem:[#allocation8 + $0x10] sm:$0xff]
    %v243 = vld [vmem:[#allocation8 + $0x18] sm:$0xff]
    %v244 = vld [vmem:[#allocation8 + $0x20] sm:$0xff]
    %v245 = vld [vmem:[#allocation8 + $0x28] sm:$0xff]
    %v246 = vld [vmem:[#allocation8 + $0x30] sm:$0xff]
    %v247 = vld [vmem:[#allocation8 + $0x38] sm:$0xff]
    %v248 = vld [vmem:[#allocation8 + $0x40] sm:$0xff]
    %v249 = vld [vmem:[#allocation8 + $0x48] sm:$0xff]
    %v250 = vld [vmem:[#allocation8 + $0x50] sm:$0xff]
    %v251 = vld [vmem:[#allocation8 + $0x58] sm:$0xff]
    %v252 = vld [vmem:[#allocation8 + $0x60] sm:$0xff]
    %v253 = vld [vmem:[#allocation8 + $0x68] sm:$0xff]
    %v254 = vld [vmem:[#allocation8 + $0x70] sm:$0xff]
    %v255 = vld [vmem:[#allocation8 + $0x78] sm:$0xff]
    %256 = vmatprep.subr.mxu0 0.0
    %257 = vmatpush1.msra.mxu0 %v255
    %258 = vmatprep.subr.mxu0 0.0
    %259 = vmatpush1.msra.mxu0 %v254
    %260 = vmatprep.subr.mxu0 0.0
    %261 = vmatpush1.msra.mxu0 %v253
    %262 = vmatprep.subr.mxu0 0.0
    %263 = vmatpush1.msra.mxu0 %v252
    %264 = vmatprep.subr.mxu0 0.0
    %265 = vmatpush1.msra.mxu0 %v251
    %266 = vmatprep.subr.mxu0 0.0
    %267 = vmatpush1.msra.mxu0 %v250
    %268 = vmatprep.subr.mxu0 0.0
    %269 = vmatpush1.msra.mxu0 %v249
    %270 = vmatprep.subr.mxu0 0.0
    %271 = vmatpush1.msra.mxu0 %v248
    %272 = vmatprep.subr.mxu0 0.0
    %273 = vmatpush1.msra.mxu0 %v247
    %274 = vmatprep.subr.mxu0 0.0
    %275 = vmatpush1.msra.mxu0 %v246
    %276 = vmatprep.subr.mxu0 0.0
    %277 = vmatpush1.msra.mxu0 %v245
    %278 = vmatprep.subr.mxu0 0.0
    %279 = vmatpush1.msra.mxu0 %v244
    %280 = vmatprep.subr.mxu0 0.0
    %281 = vmatpush1.msra.mxu0 %v243
    %282 = vmatprep.subr.mxu0 0.0
    %283 = vmatpush1.msra.mxu0 %v242
    %284 = vmatprep.subr.mxu0 0.0
    %285 = vmatpush1.msra.mxu0 %v241
    %286 = vmatprep.subr.mxu0 0.0
    %287 = vmatpush1.msra.mxu0 %v240
    %288 = vmatprep.subr.mxu0 0.0
    %289 = vmatpush2.msra.mxu0 0.0
    %290 = vmatprep.subr.mxu0 0.0
    %291 = vmatpush2.msra.mxu0 0.0
    %292 = vmatprep.subr.mxu0 0.0
    %293 = vmatpush2.msra.mxu0 0.0
    %294 = vmatprep.subr.mxu0 0.0
    %295 = vmatpush2.msra.mxu0 0.0
    %296 = vmatprep.subr.mxu0 0.0
    %297 = vmatpush2.msra.mxu0 0.0
    %298 = vmatprep.subr.mxu0 0.0
    %299 = vmatpush2.msra.mxu0 0.0
    %300 = vmatprep.subr.mxu0 0.0
    %301 = vmatpush2.msra.mxu0 0.0
    %302 = vmatprep.subr.mxu0 0.0
    %303 = vmatpush2.msra.mxu0 0.0
    %304 = vmatprep.subr.mxu0 0.0
    %305 = vmatpush2.msra.mxu0 0.0
    %306 = vmatprep.subr.mxu0 0.0
    %307 = vmatpush2.msra.mxu0 0.0
    %308 = vmatprep.subr.mxu0 0.0
    %309 = vmatpush2.msra.mxu0 0.0
    %310 = vmatprep.subr.mxu0 0.0
    %311 = vmatpush2.msra.mxu0 0.0
    %312 = vmatprep.subr.mxu0 0.0
    %313 = vmatpush2.msra.mxu0 0.0
    %314 = vmatprep.subr.mxu0 0.0
    %315 = vmatpush2.msra.mxu0 0.0
    %316 = vmatprep.subr.mxu0 0.0
    %317 = vmatpush2.msra.mxu0 0.0
    %318 = vmatprep.subr.mxu0 0.0
    %319 = vmatpush2.msra.mxu0 0.0
    %320 = vmatprep.mubr.f32.mxu0 0.0
    %321 = vmatmul.mubr.f32.gmra.mxu0 %v239
    %v322 = vpop.f32.mrf.mxu0
    %v323 = vadd.f32 0.0, %v322
    %v324 = vpop.f32.mrf.mxu0
    %325 = vdwg.mxu0
    %v326 = vrot.slane %v323, 4
    %v327 = vmax.f32 %v323, %v326
    %v328 = vrot.slane %v327, 2
    %v329 = vmax.f32 %v327, %v328
    %v330 = vrot.slane %v329, 1
    %v331 = vmax.f32 %v329, %v330
    %v332 = vsub.f32 %v323, %v331
    %v333 = vmul.f32 %v332, 1.442695
    %v334 = vpow.pop %v333
    %v335 = vrot.slane %v334, 4
    %v336 = vadd.f32 %v334, %v335
    %v337 = vrot.slane %v336, 2
    %v338 = vadd.f32 %v336, %v337
    %v339 = vrot.slane %v338, 1
    %v340 = vadd.f32 %v338, %v339
    %v341 = vrcp.pop %v340
    %v342 = vmul.f32 %v334, %v341
    %343 = vst [vmem:[#allocation9] sm:$0xff] %v342
    // Predicated region
    $region34: #{forward.1} parent=1 // pred_check
      _
    $region35: #{forward.1} parent=1 // pred_check_branch
      %345 = sbr.rel (0) target = $region37
    $region36: #{forward.1} parent=1 // pred_region
      %s347 = ssub.s32 128, 128
      %348 = vsyncadd [#allocation5], %s347
      %s350 = sshll.u32 [#allocation9], 4
      %s351 = int_to_ptr.vmem [resolvable:$true] %s350
      %353 = dma.vmem_to_hbm [thread:$0]  %s351, 128, %s4, [#allocation5]
    $region37: #{forward.1} parent=1 // pred_fallthru
      _
    // Predicated region
    $region38: #{forward.1} parent=1 // pred_check
      _
    $region39: #{forward.1} parent=1 // pred_check_branch
      %355 = sbr.rel (0) target = $region41
    $region40: #{forward.1} parent=1 // pred_region
      %356 = dma.done [#allocation5], 128
    $region41: #{forward.1} parent=1 // pred_fallthru
      _
    %357 = vsyncpa [#allocation4], 1
    %358 = vsyncpa [#allocation7], 1
    %359 = vsyncpa [#allocation5], 1

</llo_original>
